<compile_context>
chip_gen: v7x
topology: tpu7x:2x2x1
jax: 0.10.0
libtpu: 0.0.40
codegen_flags: <defaults>
</compile_context>

<pallas_src>
import functools

import jax
import jax.numpy as jnp
from jax.experimental import pallas as pl
from jax.experimental.pallas import tpu as pltpu

_LANE = 128
_SUBLANE = 8
# Below this activation size a fused XLA add beats the pallas_call overhead.
_PALLAS_MIN_BYTES = 1 << 20


def _make_pe(d_model: int, max_len: int = 5000, dtype=jnp.float32) -> jnp.ndarray:
    """Deterministic sin/cos positional-encoding buffer, shape (max_len, 1, d_model)."""
    position = jnp.arange(max_len, dtype=jnp.float32)[:, None]
    div_term = jnp.exp(
        jnp.arange(0, d_model, 2, dtype=jnp.float32)
        * (-jnp.log(jnp.float32(10000.0)) / d_model)
    )
    ang = position * div_term
    pe = jnp.zeros((max_len, d_model), dtype=jnp.float32)
    pe = pe.at[:, 0::2].set(jnp.sin(ang))
    pe = pe.at[:, 1::2].set(jnp.cos(ang))
    return pe[:, None, :].astype(dtype)  # (max_len, 1, d_model)


# --------------------------------------------------------------------------
# Chip-aware parameters (VMEM budget / limit, TensorCore count).
# --------------------------------------------------------------------------
@functools.lru_cache(maxsize=1)
def _chip_params():
    vmem_cap = 64 * 1024 * 1024  # conservative default (v7x-sized VMEM)
    try:
        info = pltpu.get_tpu_info()
        cap = getattr(info, "vmem_capacity_bytes", None)
        if cap:
            vmem_cap = int(cap)
    except Exception:
        pass
    ncores = 1
    try:
        kind = jax.devices()[0].device_kind.lower()
        if "v7" in kind:  # v7x has 2 TensorCores per chip
            ncores = 2
    except Exception:
        pass
    # Block working-set budget (already counts double buffering) and the
    # scoped VMEM limit handed to Mosaic. v5e/v6e (128 MiB): 48 / 64 MiB;
    # v7x (64 MiB): 24 / 32 MiB.
    budget = (vmem_cap * 3) // 8
    limit = vmem_cap // 2
    return budget, limit, ncores


def _round_up(x: int, m: int) -> int:
    return -(-x // m) * m


def _pick_seq_tile(seq_len: int, bytes_per_row: int, budget: int,
                   force_split: bool) -> int:
    """Largest sublane-aligned seq tile whose double-buffered blocks fit `budget`.

    `bytes_per_row` already includes 2x(x block) + 2x(out block) + 2x(pe block)
    per sequence row.  `force_split` requests >= 2 tiles (second TensorCore).
    """
    ts = max(1, budget // max(1, bytes_per_row))
    if ts >= seq_len:
        ts = seq_len
        if force_split and seq_len > _SUBLANE:
            # Split on a padded-up (cdiv) tile so sublane alignment holds even
            # when seq_len/2 is not a multiple of 8; grid becomes 2 tiles.
            ts = min(seq_len, _round_up(pl.cdiv(seq_len, 2), _SUBLANE))
    else:
        ts = max(min(_SUBLANE, seq_len), (ts // _SUBLANE) * _SUBLANE)
        ts = min(ts, seq_len)
        if force_split:
            # Prefer an even tile count so the two cores stay balanced.
            ntiles = pl.cdiv(seq_len, ts)
            if ntiles > 1 and ntiles % 2 == 1:
                cand = min(seq_len, _round_up(pl.cdiv(seq_len, ntiles + 1), _SUBLANE))
                if cand >= _SUBLANE and cand * bytes_per_row <= budget:
                    ts = cand
    return int(ts)


# --------------------------------------------------------------------------
# Kernels
# --------------------------------------------------------------------------
def _add_pe_3d_kernel(x_ref, pe_ref, o_ref):
    # x_ref: (tS, tB, D), pe_ref: (tS, 1, D) -> broadcast add over batch.
    pe_blk = pe_ref[...]
    if pe_blk.dtype != x_ref.dtype:  # static (trace-time) check; no-op if equal
        pe_blk = pe_blk.astype(x_ref.dtype)
    o_ref[...] = x_ref[...] + pe_blk


def _folded_kernel(batch: int):
    # x_ref: (tS, B*D), pe_ref: (tS, D); D is 128-aligned on this path so the
    # lane-repeat of pe is a set of aligned vreg copies.
    def kernel(x_ref, pe_ref, o_ref):
        pe_row = pe_ref[...]
        if pe_row.dtype != x_ref.dtype:
            pe_row = pe_row.astype(x_ref.dtype)
        if batch > 1:
            pe_row = jnp.tile(pe_row, (1, batch))
        o_ref[...] = x_ref[...] + pe_row
    return kernel


# --------------------------------------------------------------------------
# Pallas paths
# --------------------------------------------------------------------------
@jax.jit
def _pallas_add_pe_3d(x, pe):
    """3-D layout: block (tS, tB, D); pe stays (tS, 1, D) (no HBM broadcast)."""
    S, B, D = x.shape
    item = jnp.dtype(x.dtype).itemsize
    pe_item = jnp.dtype(pe.dtype).itemsize
    budget, vmem_limit, ncores = _chip_params()

    min_ts = min(_SUBLANE, S)
    # Batch tile: the whole batch if it fits, otherwise the largest multiple
    # of the sublane count that keeps a min_ts-row block within budget.
    tB = B
    if min_ts * (4 * tB * D * item + 2 * D * pe_item) > budget and B > _SUBLANE:
        avail = budget - min_ts * 2 * D * pe_item
        tB = avail // (min_ts * 4 * D * item)
        tB = max(_SUBLANE, (tB // _SUBLANE) * _SUBLANE)
        tB = min(tB, B)
    grid_b = int(pl.cdiv(B, tB))

    bytes_per_row = 4 * tB * D * item + 2 * D * pe_item
    tS = _pick_seq_tile(S, bytes_per_row, budget,
                        force_split=(ncores > 1 and grid_b == 1))
    grid = (int(pl.cdiv(S, tS)), grid_b)

    return pl.pallas_call(
        _add_pe_3d_kernel,
        out_shape=jax.ShapeDtypeStruct((S, B, D), x.dtype),
        grid_spec=pltpu.PrefetchScalarGridSpec(
            num_scalar_prefetch=0,
            grid=grid,
            in_specs=[
                pl.BlockSpec((tS, tB, D), lambda i, j: (i, j, 0)),
                # Full pe buffer is passed; block indexing performs pe[:S].
                pl.BlockSpec((tS, 1, D), lambda i, j: (i, 0, 0)),
            ],
            out_specs=pl.BlockSpec((tS, tB, D), lambda i, j: (i, j, 0)),
        ),
        compiler_params=pltpu.CompilerParams(
            dimension_semantics=("parallel", "parallel"),
            vmem_limit_bytes=int(vmem_limit),
        ),
        cost_estimate=pl.CostEstimate(
            flops=S * B * D,
            transcendentals=0,
            bytes_accessed=2 * S * B * D * item + S * D * pe_item,
        ),
    )(x, pe)


@jax.jit
def _pallas_add_pe_folded(x, pe):
    """Lane-dense layout for B < 8 with D % 128 == 0: (S, B, D) -> (S, B*D).

    pe is passed as a (max_len, D) view (free unit-dim squeeze) and broadcast
    over the batch in-kernel, so no broadcast copy ever touches HBM.
    """
    S, B, D = x.shape
    W = B * D
    item = jnp.dtype(x.dtype).itemsize
    pe_item = jnp.dtype(pe.dtype).itemsize
    budget, vmem_limit, ncores = _chip_params()

    x2 = x.reshape(S, W)                 # free (layout-preserving) reshape
    pe2 = jnp.squeeze(pe, axis=1)        # (max_len, D), free squeeze

    bytes_per_row = 4 * W * item + 2 * D * pe_item
    tS = _pick_seq_tile(S, bytes_per_row, budget, force_split=(ncores > 1))
    grid = (int(pl.cdiv(S, tS)),)

    out2 = pl.pallas_call(
        _folded_kernel(B),
        out_shape=jax.ShapeDtypeStruct((S, W), x.dtype),
        grid_spec=pltpu.PrefetchScalarGridSpec(
            num_scalar_prefetch=0,
            grid=grid,
            in_specs=[
                pl.BlockSpec((tS, W), lambda i: (i, 0)),
                pl.BlockSpec((tS, D), lambda i: (i, 0)),
            ],
            out_specs=pl.BlockSpec((tS, W), lambda i: (i, 0)),
        ),
        compiler_params=pltpu.CompilerParams(
            dimension_semantics=("parallel",),
            vmem_limit_bytes=int(vmem_limit),
        ),
        cost_estimate=pl.CostEstimate(
            flops=S * W,
            transcendentals=0,
            bytes_accessed=2 * S * W * item + S * D * pe_item,
        ),
    )(x2, pe2)
    return out2.reshape(S, B, D)


@jax.jit
def _xla_add_pe(x, pe):
    S = x.shape[0]
    return x + pe[:S].astype(x.dtype)


# --------------------------------------------------------------------------
# Dispatcher
# --------------------------------------------------------------------------
def positional_encoding_forward(x, pe, *, force_pallas: bool = False):
    """out = x + pe[:S], pe broadcast over batch. x: (S, B, D); pe: (max_len, 1, D)."""
    S, B, D = x.shape
    item = jnp.dtype(x.dtype).itemsize
    pe_item = jnp.dtype(pe.dtype).itemsize
    if not force_pallas and x.size * item < _PALLAS_MIN_BYTES:
        # Tiny activations: a fused XLA add beats the pallas_call launch overhead.
        return _xla_add_pe(x, pe)

    budget, _, _ = _chip_params()
    min_ts = min(_SUBLANE, S)

    # Lane-folded path: small batch with lane-aligned D -> fully dense vregs.
    folded_ok = (
        D % _LANE == 0
        and B < _SUBLANE
        and S >= _SUBLANE  # guarantees sublane-aligned seq tiles
        and _SUBLANE * (4 * B * D * item + 2 * D * pe_item) <= budget
    )
    if folded_ok:
        return _pallas_add_pe_folded(x, pe)

    # 3-D path: dense sublanes for B >= 8; also the correct fallback for
    # unaligned D (block dims equal the full array dims, which is legal).
    min_tb = min(_SUBLANE, B)
    if min_ts * (4 * min_tb * D * item + 2 * D * pe_item) <= budget:
        return _pallas_add_pe_3d(x, pe)

    # Pathologically wide rows (even an (8, 8, D) block overflows VMEM): the
    # fused XLA add is already at the HBM roofline for a pure broadcast add.
    return _xla_add_pe(x, pe)


# --------------------------------------------------------------------------
# Self-test
# --------------------------------------------------------------------------
if __name__ == "__main__":
    key = jax.random.PRNGKey(0)
    k1, k2, k3 = jax.random.split(key, 3)

    # --- Case 1: the module's toy shape (S=8, B=2, D=32); D unaligned -> 3-D path.
    S, B, D = 8, 2, 32
    x1 = jax.random.normal(k1, (S, B, D), dtype=jnp.float32)
    pe1 = _make_pe(D, 64)
    ref1 = x1 + pe1[:S]  # reference computed BEFORE the kernel call
    out1 = jax.block_until_ready(
        positional_encoding_forward(x1, pe1, force_pallas=True)
    )
    assert out1.shape == (S, B, D)
    assert jnp.allclose(out1, ref1, atol=1e-6, rtol=1e-6), "small-case mismatch"

    # Dispatcher (fused XLA path at this tiny size) must agree as well.
    out_disp = jax.block_until_ready(positional_encoding_forward(x1, pe1))
    assert jnp.allclose(out_disp, ref1, atol=1e-6, rtol=1e-6), "dispatch mismatch"

    # --- Case 2: B < 8 with lane-aligned D -> folded lane-dense path.
    S2, B2, D2 = 64, 4, 128
    x2 = jax.random.normal(k2, (S2, B2, D2), dtype=jnp.float32)
    pe2 = _make_pe(D2, 256)
    ref2 = x2 + pe2[:S2]
    out2 = jax.block_until_ready(
        positional_encoding_forward(x2, pe2, force_pallas=True)
    )
    assert jnp.allclose(out2, ref2, atol=1e-6, rtol=1e-6), "folded-case mismatch"

    # --- Case 3: B >= 8 with lane-aligned D -> dense 3-D path (seq/batch grid).
    S3, B3, D3 = 32, 8, 128
    x3 = jax.random.normal(k3, (S3, B3, D3), dtype=jnp.float32)
    pe3 = _make_pe(D3, 64)
    ref3 = x3 + pe3[:S3]
    out3 = jax.block_until_ready(
        positional_encoding_forward(x3, pe3, force_pallas=True)
    )
    assert jnp.allclose(out3, ref3, atol=1e-6, rtol=1e-6), "aligned-case mismatch"

    print("KERNEL_OK")
</pallas_src>

<mosaic_0001>
module attributes {stable_mosaic.version = 11 : i64} {
  func.func @_add_pe_3d_kernel(%arg0: i32, %arg1: i32, %arg2: memref<8x2x32xf32, #tpu.memory_space<vmem>>, %arg3: memref<8x1x32xf32, #tpu.memory_space<vmem>>, %arg4: memref<8x2x32xf32, #tpu.memory_space<vmem>>) attributes {dimension_semantics = [#tpu.dimension_semantics<parallel>, #tpu.dimension_semantics<parallel>], iteration_bounds = array<i64: 1, 1>, scalar_prefetch = 0 : i64, scratch_operands = 0 : i64, tpu.core_type = #tpu.core_type<tc>, window_params = [{transform_indices = @transform_0, window_bounds = array<i64: 8, 2, 32>}, {transform_indices = @transform_1, window_bounds = array<i64: 8, 1, 32>}, {transform_indices = @transform_2, window_bounds = array<i64: 8, 2, 32>}]} {
    %c0 = arith.constant 0 : index
    %c0_0 = arith.constant 0 : index
    %c0_1 = arith.constant 0 : index
    %0 = vector.load %arg3[%c0, %c0_0, %c0_1] : memref<8x1x32xf32, #tpu.memory_space<vmem>>, vector<8x1x32xf32>
    %c0_2 = arith.constant 0 : index
    %c0_3 = arith.constant 0 : index
    %c0_4 = arith.constant 0 : index
    %1 = vector.load %arg2[%c0_2, %c0_3, %c0_4] : memref<8x2x32xf32, #tpu.memory_space<vmem>>, vector<8x2x32xf32>
    %2 = vector.broadcast %0 : vector<8x1x32xf32> to vector<8x2x32xf32>
    %3 = arith.addf %1, %2 : vector<8x2x32xf32>
    %c0_5 = arith.constant 0 : index
    %c0_6 = arith.constant 0 : index
    %c0_7 = arith.constant 0 : index
    %4 = vector.load %arg4[%c0_5, %c0_6, %c0_7] : memref<8x2x32xf32, #tpu.memory_space<vmem>>, vector<8x2x32xf32>
    tpu.vector_store %arg4[%c0_5, %c0_6, %c0_7], %3 {strides = array<i32>} : memref<8x2x32xf32, #tpu.memory_space<vmem>>, vector<8x2x32xf32>,
    return
  }
  func.func @transform_0(%arg0: i32, %arg1: i32) -> (i32, i32, i32) {
    %c0_i32 = arith.constant 0 : i32
    %c0_i32_0 = arith.constant 0 : i32
    return %arg0, %arg1, %c0_i32 : i32, i32, i32
  }
  func.func @transform_1(%arg0: i32, %arg1: i32) -> (i32, i32, i32) {
    %c0_i32 = arith.constant 0 : i32
    %c0_i32_0 = arith.constant 0 : i32
    %c0_i32_1 = arith.constant 0 : i32
    return %arg0, %c0_i32, %c0_i32_0 : i32, i32, i32
  }
  func.func @transform_2(%arg0: i32, %arg1: i32) -> (i32, i32, i32) {
    %c0_i32 = arith.constant 0 : i32
    %c0_i32_0 = arith.constant 0 : i32
    return %arg0, %arg1, %c0_i32 : i32, i32, i32
  }
}

</mosaic_0001>

<llo_original>
// kernel: _pallas_add_pe_3d.1
$region0: #{_pallas_add_pe_3d.1}
  #allocation0 [shape = 'u32[]', space=smem, size = 0x4, offset = 0x4, fixed_abs, tag = 'smem constant byte address 0x4 - core index']
  #allocation1 [shape = 'u32[144,128]{1,0:T(1,128)}', space=vmem, size = 0x12000, scoped, tag = 'internal scratch']
  %s0 = inlined_call_operand.vmem [shape: f32[8,2,32], index: 0, kind: input, shape index: {}]
  %s1 = inlined_call_operand.vmem [shape: f32[64,1,32], index: 1, kind: input, shape index: {}]
  %s2 = inlined_call_operand.hbm [shape: f32[8,2,32], index: 2, kind: output, shape index: {}]
  %s3 = sld [smem:[#allocation0]]
  $region18: #{_pallas_add_pe_3d.1} parent=0
    _
  %s5 = ssub.s32 1, %s3
  %s6 = scalar_select 0, %s5, %s3
  $region1: #{_pallas_add_pe_3d.1} parent=0
    #allocation2 [shape = 'u8[8192]{0}', space=vmem, size = 0x2000, scoped, tag = 'output window, operand 0, single buffered']
    #allocation3 [shape = 's32[1]{0}', space=sflag, size = 0x4, scoped, tag = 'scoped memory for _pallas_add_pe_3d.1']
    %7 = vsyncpa [#allocation3], 0
    // Predicated region
    $region2: #{_pallas_add_pe_3d.1} parent=1 // pred_check
      _
    $region3: #{_pallas_add_pe_3d.1} parent=1 // pred_check_branch
      %9 = sbr.rel (0) target = $region5
    $region4: #{_pallas_add_pe_3d.1} parent=1 // pred_region
      _
    $region5: #{_pallas_add_pe_3d.1} parent=1 // pred_fallthru
      _
    // Predicated region
    $region6: #{_pallas_add_pe_3d.1} parent=1 // pred_check
      _
    $region7: #{_pallas_add_pe_3d.1} parent=1 // pred_check_branch
      %11 = sbr.rel (0) target = $region9
    $region8: #{_pallas_add_pe_3d.1} parent=1 // pred_region
      _
    $region9: #{_pallas_add_pe_3d.1} parent=1 // pred_fallthru
      _
    %v12 = vld [vmem:[%s1] sm:$0x1]
    %v13 = vld [vmem:[%s1 + $0x1] sm:$0x1]
    %v14 = vld [vmem:[%s1 + $0x2] sm:$0x1]
    %v15 = vld [vmem:[%s1 + $0x3] sm:$0x1]
    %v16 = vld [vmem:[%s1 + $0x4] sm:$0x1]
    %v17 = vld [vmem:[%s1 + $0x5] sm:$0x1]
    %v18 = vld [vmem:[%s1 + $0x6] sm:$0x1]
    %v19 = vld [vmem:[%s1 + $0x7] sm:$0x1]
    %v20 = vld [vmem:[%s0] sm:$0x3]
    %v21 = vld [vmem:[%s0 + $0x2] sm:$0x3]
    %v22 = vld [vmem:[%s0 + $0x4] sm:$0x3]
    %v23 = vld [vmem:[%s0 + $0x6] sm:$0x3]
    %v24 = vld [vmem:[%s0 + $0x8] sm:$0x3]
    %v25 = vld [vmem:[%s0 + $0xa] sm:$0x3]
    %v26 = vld [vmem:[%s0 + $0xc] sm:$0x3]
    %v27 = vld [vmem:[%s0 + $0xe] sm:$0x3]
    %v36 = vlaneseq
    %v37 = vshrl.u32 %v36, 7
    %v38 = vsub.s32 0, %v37
    %v39 = vrot.slane %v12, %v38
    %v40 = vlaneseq
    %v41 = vshrl.u32 %v40, 7
    %v42 = vsub.s32 0, %v41
    %v43 = vrot.slane %v13, %v42
    %v44 = vlaneseq
    %v45 = vshrl.u32 %v44, 7
    %v46 = vsub.s32 0, %v45
    %v47 = vrot.slane %v14, %v46
    %v48 = vlaneseq
    %v49 = vshrl.u32 %v48, 7
    %v50 = vsub.s32 0, %v49
    %v51 = vrot.slane %v15, %v50
    %v52 = vlaneseq
    %v53 = vshrl.u32 %v52, 7
    %v54 = vsub.s32 0, %v53
    %v55 = vrot.slane %v16, %v54
    %v56 = vlaneseq
    %v57 = vshrl.u32 %v56, 7
    %v58 = vsub.s32 0, %v57
    %v59 = vrot.slane %v17, %v58
    %v60 = vlaneseq
    %v61 = vshrl.u32 %v60, 7
    %v62 = vsub.s32 0, %v61
    %v63 = vrot.slane %v18, %v62
    %v64 = vlaneseq
    %v65 = vshrl.u32 %v64, 7
    %v66 = vsub.s32 0, %v65
    %v67 = vrot.slane %v19, %v66
    %v76 = vadd.f32 %v20, %v39
    %v77 = vadd.f32 %v21, %v43
    %v78 = vadd.f32 %v22, %v47
    %v79 = vadd.f32 %v23, %v51
    %v80 = vadd.f32 %v24, %v55
    %v81 = vadd.f32 %v25, %v59
    %v82 = vadd.f32 %v26, %v63
    %v83 = vadd.f32 %v27, %v67
    %vm84 = vcmask 254976
    %85 = vst.msk [vmem:[#allocation2] sm:$0x3] %vm84, %v76
    %86 = vst.msk [vmem:[#allocation2 + $0x2] sm:$0x3] %vm84, %v77
    %87 = vst.msk [vmem:[#allocation2 + $0x4] sm:$0x3] %vm84, %v78
    %88 = vst.msk [vmem:[#allocation2 + $0x6] sm:$0x3] %vm84, %v79
    %89 = vst.msk [vmem:[#allocation2 + $0x8] sm:$0x3] %vm84, %v80
    %90 = vst.msk [vmem:[#allocation2 + $0xa] sm:$0x3] %vm84, %v81
    %91 = vst.msk [vmem:[#allocation2 + $0xc] sm:$0x3] %vm84, %v82
    %92 = vst.msk [vmem:[#allocation2 + $0xe] sm:$0x3] %vm84, %v83
    // Predicated region
    $region10: #{_pallas_add_pe_3d.1} parent=1 // pred_check
      _
    $region11: #{_pallas_add_pe_3d.1} parent=1 // pred_check_branch
      %94 = sbr.rel (0) target = $region13
    $region12: #{_pallas_add_pe_3d.1} parent=1 // pred_region
      %s96 = ssub.s32 256, 256
      %97 = vsyncadd [#allocation3], %s96
      %s98 = sshll.u32 [#allocation2], 4
      %s99 = int_to_ptr.vmem [resolvable:$true] %s98
      %104 = dma.vmem_to_hbm [thread:$0]  %s99, 256, %s2, [#allocation3], 32, 32, 2
    $region13: #{_pallas_add_pe_3d.1} parent=1 // pred_fallthru
      _
    // Predicated region
    $region14: #{_pallas_add_pe_3d.1} parent=1 // pred_check
      _
    $region15: #{_pallas_add_pe_3d.1} parent=1 // pred_check_branch
      %106 = sbr.rel (0) target = $region17
    $region16: #{_pallas_add_pe_3d.1} parent=1 // pred_region
      %107 = dma.done [#allocation3], 256
    $region17: #{_pallas_add_pe_3d.1} parent=1 // pred_fallthru
      _
    %108 = vsyncpa [#allocation3], 1

</llo_original>
